<compile_context>
chip_gen: v5e
topology: v5e:2x2
jax: 0.10.0
libtpu: 0.0.40
codegen_flags: <defaults>
</compile_context>

<pallas_src>
import functools

import jax
import jax.numpy as jnp
from jax import lax
from jax.experimental import pallas as pl
from jax.experimental.pallas import tpu as pltpu


_TARGET_TILE_BYTES = 2 * 1024 * 1024  # ~2 MiB per tile (safe at v5e scoped-VMEM defaults)


def _round_up(n: int, m: int) -> int:
    return ((n + m - 1) // m) * m


def _pick_tile_rows(n_rows: int, row_bytes: int, sub: int, requested) -> int:
    """Sublane-aligned row-tile size (never larger than the array)."""
    if n_rows <= sub:
        # Tile equals the full (tiny) row extent -> always a legal block shape.
        return n_rows
    max_tile = (n_rows // sub) * sub  # largest aligned tile that fits inside the array
    if requested is not None:
        return min(_round_up(max(int(requested), sub), sub), max_tile)
    t = max(sub, (_TARGET_TILE_BYTES // row_bytes) // sub * sub)
    t = min(t, max_tile)
    # Keep >= 2 grid steps when possible so v7x megacore can split the
    # "parallel" row axis across both TensorCores (no-op on v5e/v6e).
    if t == n_rows and n_rows >= 2 * sub:
        t = min(_round_up((n_rows + 1) // 2, sub), max_tile)
    return t


def _layer_norm_kernel(x_ref, params_ref, o_ref, *, feat: int, eps: float, approx: bool):
    """Simple path: one (tile_rows, H) block, per-row reduction (H >= 128 or odd H)."""
    x = x_ref[...].astype(jnp.float32)                       # (TR, H)
    p = params_ref[...].astype(jnp.float32)                  # (2, H) resident consts (f32)
    gamma = p[0:1, :]
    beta = p[1:2, :]

    mean = jnp.mean(x, axis=-1, keepdims=True)               # (TR, 1)
    d = x - mean
    var_unbiased = jnp.sum(d * d, axis=-1, keepdims=True) * (1.0 / (feat - 1))
    std = jnp.sqrt(var_unbiased)                             # (TR, 1)
    inv = pl.reciprocal(std + eps, approx=approx)            # eps on std (torch semantics)
    o_ref[...] = ((d * inv) * gamma + beta).astype(o_ref.dtype)


def _layer_norm_packed_kernel(x_ref, params_ref, seg_ref, o_ref, *,
                              feat: int, eps: float, approx: bool):
    """Lane-dense path for feat < 128 dividing 128: G = 128 // feat logical rows
    per 128-lane vreg row; segmented sums via a block-diagonal matmul on the MXU."""
    x = x_ref[...].astype(jnp.float32)                       # (TR, 128)
    p = params_ref[...].astype(jnp.float32)                  # (2, 128): gamma/beta tiled G times
    gamma = p[0:1, :]
    beta = p[1:2, :]
    seg = seg_ref[...]                                       # (128, 128) block-diag ones (f32)

    # Per-feature-group sums, broadcast back across each group's lanes.
    seg_sum = jnp.dot(x, seg, precision=lax.Precision.HIGHEST,
                      preferred_element_type=jnp.float32)    # (TR, 128)
    mean = seg_sum * (1.0 / feat)
    d = x - mean
    sq_sum = jnp.dot(d * d, seg, precision=lax.Precision.HIGHEST,
                     preferred_element_type=jnp.float32)
    std = jnp.sqrt(sq_sum * (1.0 / (feat - 1)))
    inv = pl.reciprocal(std + eps, approx=approx)
    o_ref[...] = ((d * inv) * gamma + beta).astype(o_ref.dtype)


def layer_norm(x, weight, bias, *, eps: float = 1e-6, tile_rows=None,
               approx_reciprocal=None):
    """LayerNorm over the last dim of x, matching the BERT4NILM PyTorch module."""
    orig_shape = x.shape
    H = orig_shape[-1]
    assert H >= 2, "unbiased std needs at least 2 features"

    R = 1
    for dim in orig_shape[:-1]:
        R *= dim

    itemsize = jnp.dtype(x.dtype).itemsize
    sub = {4: 8, 2: 16, 1: 32}.get(itemsize, 8)
    if approx_reciprocal is None:
        approx_reciprocal = itemsize < 4  # exact for f32; EUP approx for bf16/fp8

    gamma = weight.reshape(-1).astype(jnp.float32)
    beta = bias.reshape(-1).astype(jnp.float32)

    packed = (H < 128) and (128 % H == 0) and (R % (128 // H) == 0)

    if packed:
        G = 128 // H
        Hp = 128
        Rv = R // G
        x2 = x.reshape(Rv, Hp)                               # contiguous: no HBM copy
        params = jnp.stack([jnp.tile(gamma, G), jnp.tile(beta, G)], axis=0)  # (2, 128) f32
        lane = jnp.arange(128, dtype=jnp.int32)
        seg = (lane[:, None] // H == lane[None, :] // H).astype(jnp.float32)  # (128, 128)
        kernel = functools.partial(_layer_norm_packed_kernel, feat=H,
                                   eps=float(eps), approx=bool(approx_reciprocal))
        extra_inputs = (seg,)
        extra_specs = [pl.BlockSpec((128, 128), lambda i: (0, 0))]
        const_bytes = params.size * 4 + 128 * 128 * 4
    else:
        Hp = H
        Rv = R
        x2 = x.reshape(Rv, Hp)
        params = jnp.stack([gamma, beta], axis=0)            # (2, H) f32
        kernel = functools.partial(_layer_norm_kernel, feat=H,
                                   eps=float(eps), approx=bool(approx_reciprocal))
        extra_inputs = ()
        extra_specs = []
        const_bytes = params.size * 4

    tr = _pick_tile_rows(Rv, Hp * itemsize, sub, tile_rows)
    grid = (pl.cdiv(Rv, tr),)  # ragged last block handled by Pallas masking

    # Scoped-VMEM budget from the actual footprint: double-buffered in + out
    # tiles, resident consts, and f32 working-copy headroom (x2 safety margin).
    tile_bytes = tr * Hp * itemsize
    f32_tile = tr * Hp * 4
    needed = 4 * tile_bytes + 2 * const_bytes + 2 * f32_tile
    vmem_limit = int(min(48 << 20, max(2 * needed, 16 << 20)))

    out = pl.pallas_call(
        kernel,
        out_shape=jax.ShapeDtypeStruct((Rv, Hp), x.dtype),
        grid_spec=pltpu.PrefetchScalarGridSpec(
            num_scalar_prefetch=0,
            grid=grid,
            in_specs=[
                pl.BlockSpec((tr, Hp), lambda i: (i, 0)),    # x row tile
                pl.BlockSpec((2, Hp), lambda i: (0, 0)),     # [gamma; beta] (resident)
            ] + extra_specs,                                 # (+ seg matrix when packed)
            out_specs=pl.BlockSpec((tr, Hp), lambda i: (i, 0)),
        ),
        compiler_params=pltpu.CompilerParams(
            dimension_semantics=("parallel",),               # row tiles are independent
            vmem_limit_bytes=vmem_limit,
        ),
    )(x2, params, *extra_inputs)

    return out.reshape(orig_shape)


def _reference_layer_norm(x, weight, bias, eps):
    """Pure-JAX reference of the torch module (unbiased std, eps on std)."""
    xf = x.astype(jnp.float32)
    H = x.shape[-1]
    mean = xf.mean(-1, keepdims=True)
    d = xf - mean
    std = jnp.sqrt((d * d).sum(-1, keepdims=True) / (H - 1))
    return (weight * d / (std + eps) + bias).astype(x.dtype)


if __name__ == "__main__":
    # Small shapes implied by the module's use in BERT4NILM: (batch, seq, hidden).
    B, S, H = 2, 16, 32

    key = jax.random.PRNGKey(0)
    kx, kw, kb = jax.random.split(key, 3)

    x = jax.random.normal(kx, (B, S, H), dtype=jnp.float32)
    # Non-trivial affine params to exercise the full formula.
    ln_weight = 1.0 + 0.1 * jax.random.normal(kw, (H,), dtype=jnp.float32)
    ln_bias = 0.1 * jax.random.normal(kb, (H,), dtype=jnp.float32)

    out = layer_norm(x, ln_weight, ln_bias, eps=1e-6)
    jax.block_until_ready(out)
    ref = _reference_layer_norm(x, ln_weight, ln_bias, 1e-6)
    assert out.shape == (B, S, H)
    assert jnp.allclose(out, ref, atol=1e-4, rtol=1e-4)

    # Multi-step packed grid with a ragged last block (pipelining + masking).
    x2 = jax.random.normal(jax.random.PRNGKey(1), (2, 40, H), dtype=jnp.float32)
    out2 = layer_norm(x2, ln_weight, ln_bias, eps=1e-6, tile_rows=8)
    jax.block_until_ready(out2)
    assert jnp.allclose(out2, _reference_layer_norm(x2, ln_weight, ln_bias, 1e-6),
                        atol=1e-4, rtol=1e-4)

    # Fallback path: H does not divide 128, ragged row count in the simple path.
    H3 = 48
    x3 = jax.random.normal(jax.random.PRNGKey(2), (2, 13, H3), dtype=jnp.float32)
    w3 = jnp.ones((H3,), dtype=jnp.float32)
    b3 = jnp.zeros((H3,), dtype=jnp.float32)
    out3 = layer_norm(x3, w3, b3, eps=1e-6, tile_rows=8)
    jax.block_until_ready(out3)
    assert jnp.allclose(out3, _reference_layer_norm(x3, w3, b3, 1e-6),
                        atol=1e-4, rtol=1e-4)

    # Default-initialized (ones/zeros) parameters, as in the PyTorch module.
    out_default = layer_norm(x, jnp.ones((H,)), jnp.zeros((H,)), eps=1e-6)
    jax.block_until_ready(out_default)
    ref_default = _reference_layer_norm(x, jnp.ones((H,)), jnp.zeros((H,)), 1e-6)
    assert jnp.allclose(out_default, ref_default, atol=1e-4, rtol=1e-4)

    print("KERNEL_OK")
</pallas_src>

<mosaic_0001>
module attributes {stable_mosaic.version = 11 : i64} {
  func.func @_layer_norm_packed_kernel(%arg0: i32, %arg1: memref<8x128xf32, #tpu.memory_space<vmem>>, %arg2: memref<2x128xf32, #tpu.memory_space<vmem>>, %arg3: memref<128x128xf32, #tpu.memory_space<vmem>>, %arg4: memref<8x128xf32, #tpu.memory_space<vmem>>) attributes {dimension_semantics = [#tpu.dimension_semantics<parallel>], iteration_bounds = array<i64: 1>, scalar_prefetch = 0 : i64, scratch_operands = 0 : i64, tpu.core_type = #tpu.core_type<tc>, window_params = [{transform_indices = @transform_0, window_bounds = array<i64: 8, 128>}, {pipeline_mode = #tpu.pipeline_mode<synchronous>, transform_indices = @transform_1, window_bounds = array<i64: 2, 128>}, {pipeline_mode = #tpu.pipeline_mode<synchronous>, transform_indices = @transform_2, window_bounds = array<i64: 128, 128>}, {transform_indices = @transform_3, window_bounds = array<i64: 8, 128>}]} {
    %c0 = arith.constant 0 : index
    %c0_0 = arith.constant 0 : index
    %0 = vector.load %arg1[%c0, %c0_0] : memref<8x128xf32, #tpu.memory_space<vmem>>, vector<8x128xf32>
    %c0_1 = arith.constant 0 : index
    %c0_2 = arith.constant 0 : index
    %1 = vector.load %arg2[%c0_1, %c0_2] : memref<2x128xf32, #tpu.memory_space<vmem>>, vector<2x128xf32>
    %2 = vector.extract_strided_slice %1 {offsets = [0, 0], sizes = [1, 128], strides = [1, 1]} : vector<2x128xf32> to vector<1x128xf32>
    %3 = vector.extract_strided_slice %1 {offsets = [1, 0], sizes = [1, 128], strides = [1, 1]} : vector<2x128xf32> to vector<1x128xf32>
    %c0_3 = arith.constant 0 : index
    %c0_4 = arith.constant 0 : index
    %4 = vector.load %arg3[%c0_3, %c0_4] : memref<128x128xf32, #tpu.memory_space<vmem>>, vector<128x128xf32>
    %cst = arith.constant dense<0.000000e+00> : vector<8x128xf32>
    %5 = tpu.matmul %0, %4, %cst {dimension_numbers = #tpu.dot_dimension_numbers<[1], [0], [0], [1], [0, 0, 1, 1], [], []>, precision = #tpu.contract_precision<fp32>} : vector<8x128xf32>, vector<128x128xf32>, vector<8x128xf32> -> vector<8x128xf32>
    %cst_5 = arith.constant 3.125000e-02 : f32
    %6 = vector.broadcast %cst_5 : f32 to vector<8x128xf32>
    %7 = arith.mulf %5, %6 : vector<8x128xf32>
    %8 = arith.subf %0, %7 : vector<8x128xf32>
    %9 = arith.mulf %8, %8 : vector<8x128xf32>
    %cst_6 = arith.constant dense<0.000000e+00> : vector<8x128xf32>
    %10 = tpu.matmul %9, %4, %cst_6 {dimension_numbers = #tpu.dot_dimension_numbers<[1], [0], [0], [1], [0, 0, 1, 1], [], []>, precision = #tpu.contract_precision<fp32>} : vector<8x128xf32>, vector<128x128xf32>, vector<8x128xf32> -> vector<8x128xf32>
    %cst_7 = arith.constant 0.0322580636 : f32
    %11 = vector.broadcast %cst_7 : f32 to vector<8x128xf32>
    %12 = arith.mulf %10, %11 : vector<8x128xf32>
    %13 = math.sqrt %12 : vector<8x128xf32>
    %cst_8 = arith.constant 9.99999997E-7 : f32
    %14 = vector.broadcast %cst_8 : f32 to vector<8x128xf32>
    %15 = arith.addf %13, %14 : vector<8x128xf32>
    %16 = tpu.reciprocal %15 : vector<8x128xf32> -> vector<8x128xf32>
    %17 = arith.mulf %8, %16 : vector<8x128xf32>
    %18 = vector.broadcast %2 : vector<1x128xf32> to vector<8x128xf32>
    %19 = arith.mulf %17, %18 : vector<8x128xf32>
    %20 = vector.broadcast %3 : vector<1x128xf32> to vector<8x128xf32>
    %21 = arith.addf %19, %20 : vector<8x128xf32>
    %c0_9 = arith.constant 0 : index
    %c0_10 = arith.constant 0 : index
    %22 = vector.load %arg4[%c0_9, %c0_10] : memref<8x128xf32, #tpu.memory_space<vmem>>, vector<8x128xf32>
    tpu.vector_store %arg4[%c0_9, %c0_10], %21 {strides = array<i32>} : memref<8x128xf32, #tpu.memory_space<vmem>>, vector<8x128xf32>,
    return
  }
  func.func @transform_0(%arg0: i32) -> (i32, i32) {
    %c0_i32 = arith.constant 0 : i32
    %c0_i32_0 = arith.constant 0 : i32
    return %arg0, %c0_i32 : i32, i32
  }
  func.func @transform_1(%arg0: i32) -> (i32, i32) {
    %c0_i32 = arith.constant 0 : i32
    %c0_i32_0 = arith.constant 0 : i32
    %c0_i32_1 = arith.constant 0 : i32
    return %c0_i32, %c0_i32_0 : i32, i32
  }
  func.func @transform_2(%arg0: i32) -> (i32, i32) {
    %c0_i32 = arith.constant 0 : i32
    %c0_i32_0 = arith.constant 0 : i32
    %c0_i32_1 = arith.constant 0 : i32
    return %c0_i32, %c0_i32_0 : i32, i32
  }
  func.func @transform_3(%arg0: i32) -> (i32, i32) {
    %c0_i32 = arith.constant 0 : i32
    %c0_i32_0 = arith.constant 0 : i32
    return %arg0, %c0_i32 : i32, i32
  }
}

</mosaic_0001>

<llo_original>
// kernel: tpu_custom_call.1
$region0: #{tpu_custom_call.1}
  #allocation0 [shape = 'u32[]', space=smem, size = 0x4, offset = 0x4, fixed_abs, tag = 'smem constant byte address 0x4 - core index']
  #allocation1 [shape = 'u32[72,128]{1,0:T(1,128)}', space=vmem, size = 0x9000, scoped, tag = 'internal scratch']
  %s0 = inlined_call_operand.hbm [shape: f32[8,128], index: 0, kind: input, shape index: {}]
  %s1 = inlined_call_operand.hbm [shape: f32[2,128], index: 1, kind: input, shape index: {}]
  %s2 = inlined_call_operand.hbm [shape: f32[128,128], index: 2, kind: input, shape index: {}]
  %s3 = inlined_call_operand.hbm [shape: f32[8,128], index: 3, kind: output, shape index: {}]
  %s4 = sld [smem:[#allocation0]]
  $region34: #{tpu_custom_call.1} parent=0
    _
  %s6 = ssub.s32 1, %s4
  %s7 = scalar_select 0, %s6, %s4
  $region1: #{tpu_custom_call.1} parent=0
    #allocation2 [shape = 'u8[4096]{0}', space=vmem, size = 0x1000, scoped, tag = 'input window, operand 0, single buffered']
    #allocation3 [shape = 's32[1]{0}', space=sflag, size = 0x4, scoped, tag = 'scoped memory for tpu_custom_call.1']
    #allocation4 [shape = 's32[1]{0}', space=sflag, size = 0x4, scoped, tag = 'scoped memory for tpu_custom_call.1']
    #allocation5 [shape = 'u8[1024]{0}', space=vmem, size = 0x400, scoped, tag = 'input window, operand 1, single buffered']
    #allocation6 [shape = 's32[1]{0}', space=sflag, size = 0x4, scoped, tag = 'scoped memory for tpu_custom_call.1']
    #allocation7 [shape = 'u8[65536]{0}', space=vmem, size = 0x10000, scoped, tag = 'input window, operand 2, single buffered']
    #allocation8 [shape = 'u8[4096]{0}', space=vmem, size = 0x1000, scoped, tag = 'output window, operand 0, single buffered']
    %8 = vsyncpa [#allocation3], 0
    %9 = vsyncpa [#allocation6], 0
    %10 = vsyncpa [#allocation4], 0
    // Predicated region
    $region2: #{tpu_custom_call.1} parent=1 // pred_check
      _
    $region3: #{tpu_custom_call.1} parent=1 // pred_check_branch
      %12 = sbr.rel (0) target = $region5
    $region4: #{tpu_custom_call.1} parent=1 // pred_region
      %14 = vsyncadd [#allocation3], 0
      %s16 = sshll.u32 %s0, 4
      %s17 = int_to_ptr.hbm [resolvable:$true] %s16
      %s18 = sshll.u32 [#allocation2], 4
      %s19 = int_to_ptr.vmem [resolvable:$true] %s18
      %21 = dma.hbm_to_vmem [thread:$0]  %s17, 128, %s19, [#allocation3]
    $region5: #{tpu_custom_call.1} parent=1 // pred_fallthru
      _
    // Predicated region
    $region6: #{tpu_custom_call.1} parent=1 // pred_check
      _
    $region7: #{tpu_custom_call.1} parent=1 // pred_check_branch
      %23 = sbr.rel (0) target = $region9
    $region8: #{tpu_custom_call.1} parent=1 // pred_region
      %25 = vsyncadd [#allocation6], 0
      %s27 = sshll.u32 %s1, 4
      %s28 = int_to_ptr.hbm [resolvable:$true] %s27
      %s29 = sshll.u32 [#allocation5], 4
      %s30 = int_to_ptr.vmem [resolvable:$true] %s29
      %32 = dma.hbm_to_vmem [thread:$0]  %s28, 32, %s30, [#allocation6]
    $region9: #{tpu_custom_call.1} parent=1 // pred_fallthru
      _
    // Predicated region
    $region10: #{tpu_custom_call.1} parent=1 // pred_check
      _
    $region11: #{tpu_custom_call.1} parent=1 // pred_check_branch
      %34 = sbr.rel (0) target = $region13
    $region12: #{tpu_custom_call.1} parent=1 // pred_region
      %36 = vsyncadd [#allocation6], 0
      %s37 = sshll.u32 %s2, 4
      %s38 = int_to_ptr.hbm [resolvable:$true] %s37
      %s39 = sshll.u32 [#allocation7], 4
      %s40 = int_to_ptr.vmem [resolvable:$true] %s39
      %45 = dma.hbm_to_vmem [thread:$0]  %s38, 2048, %s40, [#allocation6], 128, 128, 8
    $region13: #{tpu_custom_call.1} parent=1 // pred_fallthru
      _
    // Predicated region
    $region14: #{tpu_custom_call.1} parent=1 // pred_check
      _
    $region15: #{tpu_custom_call.1} parent=1 // pred_check_branch
      %47 = sbr.rel (0) target = $region17
    $region16: #{tpu_custom_call.1} parent=1 // pred_region
      %49 = dma.done [#allocation3], 128
    $region17: #{tpu_custom_call.1} parent=1 // pred_fallthru
      _
    // Predicated region
    $region18: #{tpu_custom_call.1} parent=1 // pred_check
      _
    $region19: #{tpu_custom_call.1} parent=1 // pred_check_branch
      %51 = sbr.rel (0) target = $region21
    $region20: #{tpu_custom_call.1} parent=1 // pred_region
      %53 = dma.done [#allocation6], 32
    $region21: #{tpu_custom_call.1} parent=1 // pred_fallthru
      _
    // Predicated region
    $region22: #{tpu_custom_call.1} parent=1 // pred_check
      _
    $region23: #{tpu_custom_call.1} parent=1 // pred_check_branch
      %55 = sbr.rel (0) target = $region25
    $region24: #{tpu_custom_call.1} parent=1 // pred_region
      %57 = dma.done [#allocation6], 2048
    $region25: #{tpu_custom_call.1} parent=1 // pred_fallthru
      _
    %v58 = vld [vmem:[#allocation2] sm:$0xff]
    %v59 = vld [vmem:[#allocation5] sm:$0x3]
    %v60 = vld [vmem:[#allocation7] sm:$0xff]
    %v61 = vld [vmem:[#allocation7 + $0x8] sm:$0xff]
    %v62 = vld [vmem:[#allocation7 + $0x10] sm:$0xff]
    %v63 = vld [vmem:[#allocation7 + $0x18] sm:$0xff]
    %v64 = vld [vmem:[#allocation7 + $0x20] sm:$0xff]
    %v65 = vld [vmem:[#allocation7 + $0x28] sm:$0xff]
    %v66 = vld [vmem:[#allocation7 + $0x30] sm:$0xff]
    %v67 = vld [vmem:[#allocation7 + $0x38] sm:$0xff]
    %v68 = vld [vmem:[#allocation7 + $0x40] sm:$0xff]
    %v69 = vld [vmem:[#allocation7 + $0x48] sm:$0xff]
    %v70 = vld [vmem:[#allocation7 + $0x50] sm:$0xff]
    %v71 = vld [vmem:[#allocation7 + $0x58] sm:$0xff]
    %v72 = vld [vmem:[#allocation7 + $0x60] sm:$0xff]
    %v73 = vld [vmem:[#allocation7 + $0x68] sm:$0xff]
    %v74 = vld [vmem:[#allocation7 + $0x70] sm:$0xff]
    %v75 = vld [vmem:[#allocation7 + $0x78] sm:$0xff]
    %v76 = vand.u32 %v75, 4294901760
    %77 = vmatpush.msra.mxu0 %v76
    %v78 = vand.u32 %v74, 4294901760
    %79 = vmatpush.msra.mxu0 %v78
    %v80 = vand.u32 %v73, 4294901760
    %81 = vmatpush.msra.mxu0 %v80
    %v82 = vand.u32 %v72, 4294901760
    %83 = vmatpush.msra.mxu0 %v82
    %v84 = vand.u32 %v71, 4294901760
    %85 = vmatpush.msra.mxu0 %v84
    %v86 = vand.u32 %v70, 4294901760
    %87 = vmatpush.msra.mxu0 %v86
    %v88 = vand.u32 %v69, 4294901760
    %89 = vmatpush.msra.mxu0 %v88
    %v90 = vand.u32 %v68, 4294901760
    %91 = vmatpush.msra.mxu0 %v90
    %v92 = vand.u32 %v67, 4294901760
    %93 = vmatpush.msra.mxu0 %v92
    %v94 = vand.u32 %v66, 4294901760
    %95 = vmatpush.msra.mxu0 %v94
    %v96 = vand.u32 %v65, 4294901760
    %97 = vmatpush.msra.mxu0 %v96
    %v98 = vand.u32 %v64, 4294901760
    %99 = vmatpush.msra.mxu0 %v98
    %v100 = vand.u32 %v63, 4294901760
    %101 = vmatpush.msra.mxu0 %v100
    %v102 = vand.u32 %v62, 4294901760
    %103 = vmatpush.msra.mxu0 %v102
    %v104 = vand.u32 %v61, 4294901760
    %105 = vmatpush.msra.mxu0 %v104
    %v106 = vand.u32 %v60, 4294901760
    %107 = vmatpush.msra.mxu0 %v106
    %v108 = vand.u32 %v58, 4294901760
    %v109 = vsub.f32 %v58, %v108
    %v110 = vand.u32 %v109, 4294901760
    %v111 = vsub.f32 %v109, %v110
    %v112 = vand.u32 %v111, 4294901760
    %113 = vmatmul.f32.gmra.mxu0 %v112
    %v114 = vpop.f32.mrf.mxu0
    %v115 = vadd.f32 0.0, %v114
    %116 = vdwg.mxu0
    %v117 = vand.u32 %v75, 4294901760
    %v118 = vsub.f32 %v75, %v117
    %v119 = vand.u32 %v118, 4294901760
    %v120 = vsub.f32 %v118, %v119
    %v121 = vand.u32 %v120, 4294901760
    %122 = vmatpush.msra.mxu0 %v121
    %v123 = vand.u32 %v74, 4294901760
    %v124 = vsub.f32 %v74, %v123
    %v125 = vand.u32 %v124, 4294901760
    %v126 = vsub.f32 %v124, %v125
    %v127 = vand.u32 %v126, 4294901760
    %128 = vmatpush.msra.mxu0 %v127
    %v129 = vand.u32 %v73, 4294901760
    %v130 = vsub.f32 %v73, %v129
    %v131 = vand.u32 %v130, 4294901760
    %v132 = vsub.f32 %v130, %v131
    %v133 = vand.u32 %v132, 4294901760
    %134 = vmatpush.msra.mxu0 %v133
    %v135 = vand.u32 %v72, 4294901760
    %v136 = vsub.f32 %v72, %v135
    %v137 = vand.u32 %v136, 4294901760
    %v138 = vsub.f32 %v136, %v137
    %v139 = vand.u32 %v138, 4294901760
    %140 = vmatpush.msra.mxu0 %v139
    %v141 = vand.u32 %v71, 4294901760
    %v142 = vsub.f32 %v71, %v141
    %v143 = vand.u32 %v142, 4294901760
    %v144 = vsub.f32 %v142, %v143
    %v145 = vand.u32 %v144, 4294901760
    %146 = vmatpush.msra.mxu0 %v145
    %v147 = vand.u32 %v70, 4294901760
    %v148 = vsub.f32 %v70, %v147
    %v149 = vand.u32 %v148, 4294901760
    %v150 = vsub.f32 %v148, %v149
    %v151 = vand.u32 %v150, 4294901760
    %152 = vmatpush.msra.mxu0 %v151
    %v153 = vand.u32 %v69, 4294901760
    %v154 = vsub.f32 %v69, %v153
    %v155 = vand.u32 %v154, 4294901760
    %v156 = vsub.f32 %v154, %v155
    %v157 = vand.u32 %v156, 4294901760
    %158 = vmatpush.msra.mxu0 %v157
    %v159 = vand.u32 %v68, 4294901760
    %v160 = vsub.f32 %v68, %v159
    %v161 = vand.u32 %v160, 4294901760
    %v162 = vsub.f32 %v160, %v161
    %v163 = vand.u32 %v162, 4294901760
    %164 = vmatpush.msra.mxu0 %v163
    %v165 = vand.u32 %v67, 4294901760
    %v166 = vsub.f32 %v67, %v165
    %v167 = vand.u32 %v166, 4294901760
    %v168 = vsub.f32 %v166, %v167
    %v169 = vand.u32 %v168, 4294901760
    %170 = vmatpush.msra.mxu0 %v169
    %v171 = vand.u32 %v66, 4294901760
    %v172 = vsub.f32 %v66, %v171
    %v173 = vand.u32 %v172, 4294901760
    %v174 = vsub.f32 %v172, %v173
    %v175 = vand.u32 %v174, 4294901760
    %176 = vmatpush.msra.mxu0 %v175
    %v177 = vand.u32 %v65, 4294901760
    %v178 = vsub.f32 %v65, %v177
    %v179 = vand.u32 %v178, 4294901760
    %v180 = vsub.f32 %v178, %v179
    %v181 = vand.u32 %v180, 4294901760
    %182 = vmatpush.msra.mxu0 %v181
    %v183 = vand.u32 %v64, 4294901760
    %v184 = vsub.f32 %v64, %v183
    %v185 = vand.u32 %v184, 4294901760
    %v186 = vsub.f32 %v184, %v185
    %v187 = vand.u32 %v186, 4294901760
    %188 = vmatpush.msra.mxu0 %v187
    %v189 = vand.u32 %v63, 4294901760
    %v190 = vsub.f32 %v63, %v189
    %v191 = vand.u32 %v190, 4294901760
    %v192 = vsub.f32 %v190, %v191
    %v193 = vand.u32 %v192, 4294901760
    %194 = vmatpush.msra.mxu0 %v193
    %v195 = vand.u32 %v62, 4294901760
    %v196 = vsub.f32 %v62, %v195
    %v197 = vand.u32 %v196, 4294901760
    %v198 = vsub.f32 %v196, %v197
    %v199 = vand.u32 %v198, 4294901760
    %200 = vmatpush.msra.mxu0 %v199
    %v201 = vand.u32 %v61, 4294901760
    %v202 = vsub.f32 %v61, %v201
    %v203 = vand.u32 %v202, 4294901760
    %v204 = vsub.f32 %v202, %v203
    %v205 = vand.u32 %v204, 4294901760
    %206 = vmatpush.msra.mxu0 %v205
    %v207 = vand.u32 %v60, 4294901760
    %v208 = vsub.f32 %v60, %v207
    %v209 = vand.u32 %v208, 4294901760
    %v210 = vsub.f32 %v208, %v209
    %v211 = vand.u32 %v210, 4294901760
    %212 = vmatpush.msra.mxu0 %v211
    %v213 = vand.u32 %v58, 4294901760
    %214 = vmatmul.f32.gmra.mxu0 %v213
    %v215 = vpop.f32.mrf.mxu0
    %v216 = vadd.f32 %v115, %v215
    %217 = vdwg.mxu0
    %v218 = vand.u32 %v75, 4294901760
    %v219 = vsub.f32 %v75, %v218
    %220 = vmatpush.msra.mxu0 %v219
    %v221 = vand.u32 %v74, 4294901760
    %v222 = vsub.f32 %v74, %v221
    %223 = vmatpush.msra.mxu0 %v222
    %v224 = vand.u32 %v73, 4294901760
    %v225 = vsub.f32 %v73, %v224
    %226 = vmatpush.msra.mxu0 %v225
    %v227 = vand.u32 %v72, 4294901760
    %v228 = vsub.f32 %v72, %v227
    %229 = vmatpush.msra.mxu0 %v228
    %v230 = vand.u32 %v71, 4294901760
    %v231 = vsub.f32 %v71, %v230
    %232 = vmatpush.msra.mxu0 %v231
    %v233 = vand.u32 %v70, 4294901760
    %v234 = vsub.f32 %v70, %v233
    %235 = vmatpush.msra.mxu0 %v234
    %v236 = vand.u32 %v69, 4294901760
    %v237 = vsub.f32 %v69, %v236
    %238 = vmatpush.msra.mxu0 %v237
    %v239 = vand.u32 %v68, 4294901760
    %v240 = vsub.f32 %v68, %v239
    %241 = vmatpush.msra.mxu0 %v240
    %v242 = vand.u32 %v67, 4294901760
    %v243 = vsub.f32 %v67, %v242
    %244 = vmatpush.msra.mxu0 %v243
    %v245 = vand.u32 %v66, 4294901760
    %v246 = vsub.f32 %v66, %v245
    %247 = vmatpush.msra.mxu0 %v246
    %v248 = vand.u32 %v65, 4294901760
    %v249 = vsub.f32 %v65, %v248
    %250 = vmatpush.msra.mxu0 %v249
    %v251 = vand.u32 %v64, 4294901760
    %v252 = vsub.f32 %v64, %v251
    %253 = vmatpush.msra.mxu0 %v252
    %v254 = vand.u32 %v63, 4294901760
    %v255 = vsub.f32 %v63, %v254
    %256 = vmatpush.msra.mxu0 %v255
    %v257 = vand.u32 %v62, 4294901760
    %v258 = vsub.f32 %v62, %v257
    %259 = vmatpush.msra.mxu0 %v258
    %v260 = vand.u32 %v61, 4294901760
    %v261 = vsub.f32 %v61, %v260
    %262 = vmatpush.msra.mxu0 %v261
    %v263 = vand.u32 %v60, 4294901760
    %v264 = vsub.f32 %v60, %v263
    %265 = vmatpush.msra.mxu0 %v264
    %v266 = vand.u32 %v58, 4294901760
    %v267 = vsub.f32 %v58, %v266
    %268 = vmatmul.f32.gmra.mxu0 %v267
    %v269 = vpop.f32.mrf.mxu0
    %v270 = vadd.f32 %v216, %v269
    %271 = vdwg.mxu0
    %v272 = vand.u32 %v75, 4294901760
    %273 = vmatpush.msra.mxu0 %v272
    %v274 = vand.u32 %v74, 4294901760
    %275 = vmatpush.msra.mxu0 %v274
    %v276 = vand.u32 %v73, 4294901760
    %277 = vmatpush.msra.mxu0 %v276
    %v278 = vand.u32 %v72, 4294901760
    %279 = vmatpush.msra.mxu0 %v278
    %v280 = vand.u32 %v71, 4294901760
    %281 = vmatpush.msra.mxu0 %v280
    %v282 = vand.u32 %v70, 4294901760
    %283 = vmatpush.msra.mxu0 %v282
    %v284 = vand.u32 %v69, 4294901760
    %285 = vmatpush.msra.mxu0 %v284
    %v286 = vand.u32 %v68, 4294901760
    %287 = vmatpush.msra.mxu0 %v286
    %v288 = vand.u32 %v67, 4294901760
    %289 = vmatpush.msra.mxu0 %v288
    %v290 = vand.u32 %v66, 4294901760
    %291 = vmatpush.msra.mxu0 %v290
    %v292 = vand.u32 %v65, 4294901760
    %293 = vmatpush.msra.mxu0 %v292
    %v294 = vand.u32 %v64, 4294901760
    %295 = vmatpush.msra.mxu0 %v294
    %v296 = vand.u32 %v63, 4294901760
    %297 = vmatpush.msra.mxu0 %v296
    %v298 = vand.u32 %v62, 4294901760
    %299 = vmatpush.msra.mxu0 %v298
    %v300 = vand.u32 %v61, 4294901760
    %301 = vmatpush.msra.mxu0 %v300
    %v302 = vand.u32 %v60, 4294901760
    %303 = vmatpush.msra.mxu0 %v302
    %v304 = vand.u32 %v58, 4294901760
    %v305 = vsub.f32 %v58, %v304
    %v306 = vand.u32 %v305, 4294901760
    %307 = vmatmul.f32.gmra.mxu0 %v306
    %v308 = vpop.f32.mrf.mxu0
    %v309 = vadd.f32 %v270, %v308
    %310 = vdwg.mxu0
    %v311 = vand.u32 %v75, 4294901760
    %v312 = vsub.f32 %v75, %v311
    %v313 = vand.u32 %v312, 4294901760
    %314 = vmatpush.msra.mxu0 %v313
    %v315 = vand.u32 %v74, 4294901760
    %v316 = vsub.f32 %v74, %v315
    %v317 = vand.u32 %v316, 4294901760
    %318 = vmatpush.msra.mxu0 %v317
    %v319 = vand.u32 %v73, 4294901760
    %v320 = vsub.f32 %v73, %v319
    %v321 = vand.u32 %v320, 4294901760
    %322 = vmatpush.msra.mxu0 %v321
    %v323 = vand.u32 %v72, 4294901760
    %v324 = vsub.f32 %v72, %v323
    %v325 = vand.u32 %v324, 4294901760
    %326 = vmatpush.msra.mxu0 %v325
    %v327 = vand.u32 %v71, 4294901760
    %v328 = vsub.f32 %v71, %v327
    %v329 = vand.u32 %v328, 4294901760
    %330 = vmatpush.msra.mxu0 %v329
    %v331 = vand.u32 %v70, 4294901760
    %v332 = vsub.f32 %v70, %v331
    %v333 = vand.u32 %v332, 4294901760
    %334 = vmatpush.msra.mxu0 %v333
    %v335 = vand.u32 %v69, 4294901760
    %v336 = vsub.f32 %v69, %v335
    %v337 = vand.u32 %v336, 4294901760
    %338 = vmatpush.msra.mxu0 %v337
    %v339 = vand.u32 %v68, 4294901760
    %v340 = vsub.f32 %v68, %v339
    %v341 = vand.u32 %v340, 4294901760
    %342 = vmatpush.msra.mxu0 %v341
    %v343 = vand.u32 %v67, 4294901760
    %v344 = vsub.f32 %v67, %v343
    %v345 = vand.u32 %v344, 4294901760
    %346 = vmatpush.msra.mxu0 %v345
    %v347 = vand.u32 %v66, 4294901760
    %v348 = vsub.f32 %v66, %v347
    %v349 = vand.u32 %v348, 4294901760
    %350 = vmatpush.msra.mxu0 %v349
    %v351 = vand.u32 %v65, 4294901760
    %v352 = vsub.f32 %v65, %v351
    %v353 = vand.u32 %v352, 4294901760
    %354 = vmatpush.msra.mxu0 %v353
    %v355 = vand.u32 %v64, 4294901760
    %v356 = vsub.f32 %v64, %v355
    %v357 = vand.u32 %v356, 4294901760
    %358 = vmatpush.msra.mxu0 %v357
    %v359 = vand.u32 %v63, 4294901760
    %v360 = vsub.f32 %v63, %v359
    %v361 = vand.u32 %v360, 4294901760
    %362 = vmatpush.msra.mxu0 %v361
    %v363 = vand.u32 %v62, 4294901760
    %v364 = vsub.f32 %v62, %v363
    %v365 = vand.u32 %v364, 4294901760
    %366 = vmatpush.msra.mxu0 %v365
    %v367 = vand.u32 %v61, 4294901760
    %v368 = vsub.f32 %v61, %v367
    %v369 = vand.u32 %v368, 4294901760
    %370 = vmatpush.msra.mxu0 %v369
    %v371 = vand.u32 %v60, 4294901760
    %v372 = vsub.f32 %v60, %v371
    %v373 = vand.u32 %v372, 4294901760
    %374 = vmatpush.msra.mxu0 %v373
    %v375 = vand.u32 %v58, 4294901760
    %376 = vmatmul.f32.gmra.mxu0 %v375
    %v377 = vpop.f32.mrf.mxu0
    %v378 = vadd.f32 %v309, %v377
    %379 = vdwg.mxu0
    %v380 = vand.u32 %v75, 4294901760
    %381 = vmatpush.msra.mxu0 %v380
    %v382 = vand.u32 %v74, 4294901760
    %383 = vmatpush.msra.mxu0 %v382
    %v384 = vand.u32 %v73, 4294901760
    %385 = vmatpush.msra.mxu0 %v384
    %v386 = vand.u32 %v72, 4294901760
    %387 = vmatpush.msra.mxu0 %v386
    %v388 = vand.u32 %v71, 4294901760
    %389 = vmatpush.msra.mxu0 %v388
    %v390 = vand.u32 %v70, 4294901760
    %391 = vmatpush.msra.mxu0 %v390
    %v392 = vand.u32 %v69, 4294901760
    %393 = vmatpush.msra.mxu0 %v392
    %v394 = vand.u32 %v68, 4294901760
    %395 = vmatpush.msra.mxu0 %v394
    %v396 = vand.u32 %v67, 4294901760
    %397 = vmatpush.msra.mxu0 %v396
    %v398 = vand.u32 %v66, 4294901760
    %399 = vmatpush.msra.mxu0 %v398
    %v400 = vand.u32 %v65, 4294901760
    %401 = vmatpush.msra.mxu0 %v400
    %v402 = vand.u32 %v64, 4294901760
    %403 = vmatpush.msra.mxu0 %v402
    %v404 = vand.u32 %v63, 4294901760
    %405 = vmatpush.msra.mxu0 %v404
    %v406 = vand.u32 %v62, 4294901760
    %407 = vmatpush.msra.mxu0 %v406
    %v408 = vand.u32 %v61, 4294901760
    %409 = vmatpush.msra.mxu0 %v408
    %v410 = vand.u32 %v60, 4294901760
    %411 = vmatpush.msra.mxu0 %v410
    %v412 = vand.u32 %v58, 4294901760
    %413 = vmatmul.f32.gmra.mxu0 %v412
    %v414 = vpop.f32.mrf.mxu0
    %v415 = vadd.f32 %v378, %v414
    %416 = vdwg.mxu0
    %v417 = vmul.f32 %v415, 0.03125
    %v418 = vsub.f32 %v58, %v417
    %v419 = vmul.f32 %v418, %v418
    %v420 = vand.u32 %v75, 4294901760
    %421 = vmatpush.msra.mxu0 %v420
    %v422 = vand.u32 %v74, 4294901760
    %423 = vmatpush.msra.mxu0 %v422
    %v424 = vand.u32 %v73, 4294901760
    %425 = vmatpush.msra.mxu0 %v424
    %v426 = vand.u32 %v72, 4294901760
    %427 = vmatpush.msra.mxu0 %v426
    %v428 = vand.u32 %v71, 4294901760
    %429 = vmatpush.msra.mxu0 %v428
    %v430 = vand.u32 %v70, 4294901760
    %431 = vmatpush.msra.mxu0 %v430
    %v432 = vand.u32 %v69, 4294901760
    %433 = vmatpush.msra.mxu0 %v432
    %v434 = vand.u32 %v68, 4294901760
    %435 = vmatpush.msra.mxu0 %v434
    %v436 = vand.u32 %v67, 4294901760
    %437 = vmatpush.msra.mxu0 %v436
    %v438 = vand.u32 %v66, 4294901760
    %439 = vmatpush.msra.mxu0 %v438
    %v440 = vand.u32 %v65, 4294901760
    %441 = vmatpush.msra.mxu0 %v440
    %v442 = vand.u32 %v64, 4294901760
    %443 = vmatpush.msra.mxu0 %v442
    %v444 = vand.u32 %v63, 4294901760
    %445 = vmatpush.msra.mxu0 %v444
    %v446 = vand.u32 %v62, 4294901760
    %447 = vmatpush.msra.mxu0 %v446
    %v448 = vand.u32 %v61, 4294901760
    %449 = vmatpush.msra.mxu0 %v448
    %v450 = vand.u32 %v60, 4294901760
    %451 = vmatpush.msra.mxu0 %v450
    %v452 = vand.u32 %v419, 4294901760
    %v453 = vsub.f32 %v419, %v452
    %v454 = vand.u32 %v453, 4294901760
    %v455 = vsub.f32 %v453, %v454
    %v456 = vand.u32 %v455, 4294901760
    %457 = vmatmul.f32.gmra.mxu0 %v456
    %v458 = vpop.f32.mrf.mxu0
    %v459 = vadd.f32 0.0, %v458
    %460 = vdwg.mxu0
    %v461 = vand.u32 %v75, 4294901760
    %v462 = vsub.f32 %v75, %v461
    %v463 = vand.u32 %v462, 4294901760
    %v464 = vsub.f32 %v462, %v463
    %v465 = vand.u32 %v464, 4294901760
    %466 = vmatpush.msra.mxu0 %v465
    %v467 = vand.u32 %v74, 4294901760
    %v468 = vsub.f32 %v74, %v467
    %v469 = vand.u32 %v468, 4294901760
    %v470 = vsub.f32 %v468, %v469
    %v471 = vand.u32 %v470, 4294901760
    %472 = vmatpush.msra.mxu0 %v471
    %v473 = vand.u32 %v73, 4294901760
    %v474 = vsub.f32 %v73, %v473
    %v475 = vand.u32 %v474, 4294901760
    %v476 = vsub.f32 %v474, %v475
    %v477 = vand.u32 %v476, 4294901760
    %478 = vmatpush.msra.mxu0 %v477
    %v479 = vand.u32 %v72, 4294901760
    %v480 = vsub.f32 %v72, %v479
    %v481 = vand.u32 %v480, 4294901760
    %v482 = vsub.f32 %v480, %v481
    %v483 = vand.u32 %v482, 4294901760
    %484 = vmatpush.msra.mxu0 %v483
    %v485 = vand.u32 %v71, 4294901760
    %v486 = vsub.f32 %v71, %v485
    %v487 = vand.u32 %v486, 4294901760
    %v488 = vsub.f32 %v486, %v487
    %v489 = vand.u32 %v488, 4294901760
    %490 = vmatpush.msra.mxu0 %v489
    %v491 = vand.u32 %v70, 4294901760
    %v492 = vsub.f32 %v70, %v491
    %v493 = vand.u32 %v492, 4294901760
    %v494 = vsub.f32 %v492, %v493
    %v495 = vand.u32 %v494, 4294901760
    %496 = vmatpush.msra.mxu0 %v495
    %v497 = vand.u32 %v69, 4294901760
    %v498 = vsub.f32 %v69, %v497
    %v499 = vand.u32 %v498, 4294901760
    %v500 = vsub.f32 %v498, %v499
    %v501 = vand.u32 %v500, 4294901760
    %502 = vmatpush.msra.mxu0 %v501
    %v503 = vand.u32 %v68, 4294901760
    %v504 = vsub.f32 %v68, %v503
    %v505 = vand.u32 %v504, 4294901760
    %v506 = vsub.f32 %v504, %v505
    %v507 = vand.u32 %v506, 4294901760
    %508 = vmatpush.msra.mxu0 %v507
    %v509 = vand.u32 %v67, 4294901760
    %v510 = vsub.f32 %v67, %v509
    %v511 = vand.u32 %v510, 4294901760
    %v512 = vsub.f32 %v510, %v511
    %v513 = vand.u32 %v512, 4294901760
    %514 = vmatpush.msra.mxu0 %v513
    %v515 = vand.u32 %v66, 4294901760
    %v516 = vsub.f32 %v66, %v515
    %v517 = vand.u32 %v516, 4294901760
    %v518 = vsub.f32 %v516, %v517
    %v519 = vand.u32 %v518, 4294901760
    %520 = vmatpush.msra.mxu0 %v519
    %v521 = vand.u32 %v65, 4294901760
    %v522 = vsub.f32 %v65, %v521
    %v523 = vand.u32 %v522, 4294901760
    %v524 = vsub.f32 %v522, %v523
    %v525 = vand.u32 %v524, 4294901760
    %526 = vmatpush.msra.mxu0 %v525
    %v527 = vand.u32 %v64, 4294901760
    %v528 = vsub.f32 %v64, %v527
    %v529 = vand.u32 %v528, 4294901760
    %v530 = vsub.f32 %v528, %v529
    %v531 = vand.u32 %v530, 4294901760
    %532 = vmatpush.msra.mxu0 %v531
    %v533 = vand.u32 %v63, 4294901760
    %v534 = vsub.f32 %v63, %v533
    %v535 = vand.u32 %v534, 4294901760
    %v536 = vsub.f32 %v534, %v535
    %v537 = vand.u32 %v536, 4294901760
    %538 = vmatpush.msra.mxu0 %v537
    %v539 = vand.u32 %v62, 4294901760
    %v540 = vsub.f32 %v62, %v539
    %v541 = vand.u32 %v540, 4294901760
    %v542 = vsub.f32 %v540, %v541
    %v543 = vand.u32 %v542, 4294901760
    %544 = vmatpush.msra.mxu0 %v543
    %v545 = vand.u32 %v61, 4294901760
    %v546 = vsub.f32 %v61, %v545
    %v547 = vand.u32 %v546, 4294901760
    %v548 = vsub.f32 %v546, %v547
    %v549 = vand.u32 %v548, 4294901760
    %550 = vmatpush.msra.mxu0 %v549
    %v551 = vand.u32 %v60, 4294901760
    %v552 = vsub.f32 %v60, %v551
    %v553 = vand.u32 %v552, 4294901760
    %v554 = vsub.f32 %v552, %v553
    %v555 = vand.u32 %v554, 4294901760
    %556 = vmatpush.msra.mxu0 %v555
    %v557 = vand.u32 %v419, 4294901760
    %558 = vmatmul.f32.gmra.mxu0 %v557
    %v559 = vpop.f32.mrf.mxu0
    %v560 = vadd.f32 %v459, %v559
    %561 = vdwg.mxu0
    %v562 = vand.u32 %v75, 4294901760
    %v563 = vsub.f32 %v75, %v562
    %564 = vmatpush.msra.mxu0 %v563
    %v565 = vand.u32 %v74, 4294901760
    %v566 = vsub.f32 %v74, %v565
    %567 = vmatpush.msra.mxu0 %v566
    %v568 = vand.u32 %v73, 4294901760
    %v569 = vsub.f32 %v73, %v568
    %570 = vmatpush.msra.mxu0 %v569
    %v571 = vand.u32 %v72, 4294901760
    %v572 = vsub.f32 %v72, %v571
    %573 = vmatpush.msra.mxu0 %v572
    %v574 = vand.u32 %v71, 4294901760
    %v575 = vsub.f32 %v71, %v574
    %576 = vmatpush.msra.mxu0 %v575
    %v577 = vand.u32 %v70, 4294901760
    %v578 = vsub.f32 %v70, %v577
    %579 = vmatpush.msra.mxu0 %v578
    %v580 = vand.u32 %v69, 4294901760
    %v581 = vsub.f32 %v69, %v580
    %582 = vmatpush.msra.mxu0 %v581
    %v583 = vand.u32 %v68, 4294901760
    %v584 = vsub.f32 %v68, %v583
    %585 = vmatpush.msra.mxu0 %v584
    %v586 = vand.u32 %v67, 4294901760
    %v587 = vsub.f32 %v67, %v586
    %588 = vmatpush.msra.mxu0 %v587
    %v589 = vand.u32 %v66, 4294901760
    %v590 = vsub.f32 %v66, %v589
    %591 = vmatpush.msra.mxu0 %v590
    %v592 = vand.u32 %v65, 4294901760
    %v593 = vsub.f32 %v65, %v592
    %594 = vmatpush.msra.mxu0 %v593
    %v595 = vand.u32 %v64, 4294901760
    %v596 = vsub.f32 %v64, %v595
    %597 = vmatpush.msra.mxu0 %v596
    %v598 = vand.u32 %v63, 4294901760
    %v599 = vsub.f32 %v63, %v598
    %600 = vmatpush.msra.mxu0 %v599
    %v601 = vand.u32 %v62, 4294901760
    %v602 = vsub.f32 %v62, %v601
    %603 = vmatpush.msra.mxu0 %v602
    %v604 = vand.u32 %v61, 4294901760
    %v605 = vsub.f32 %v61, %v604
    %606 = vmatpush.msra.mxu0 %v605
    %v607 = vand.u32 %v60, 4294901760
    %v608 = vsub.f32 %v60, %v607
    %609 = vmatpush.msra.mxu0 %v608
    %v610 = vand.u32 %v419, 4294901760
    %v611 = vsub.f32 %v419, %v610
    %612 = vmatmul.f32.gmra.mxu0 %v611
    %v613 = vpop.f32.mrf.mxu0
    %v614 = vadd.f32 %v560, %v613
    %615 = vdwg.mxu0
    %v616 = vand.u32 %v75, 4294901760
    %617 = vmatpush.msra.mxu0 %v616
    %v618 = vand.u32 %v74, 4294901760
    %619 = vmatpush.msra.mxu0 %v618
    %v620 = vand.u32 %v73, 4294901760
    %621 = vmatpush.msra.mxu0 %v620
    %v622 = vand.u32 %v72, 4294901760
    %623 = vmatpush.msra.mxu0 %v622
    %v624 = vand.u32 %v71, 4294901760
    %625 = vmatpush.msra.mxu0 %v624
    %v626 = vand.u32 %v70, 4294901760
    %627 = vmatpush.msra.mxu0 %v626
    %v628 = vand.u32 %v69, 4294901760
    %629 = vmatpush.msra.mxu0 %v628
    %v630 = vand.u32 %v68, 4294901760
    %631 = vmatpush.msra.mxu0 %v630
    %v632 = vand.u32 %v67, 4294901760
    %633 = vmatpush.msra.mxu0 %v632
    %v634 = vand.u32 %v66, 4294901760
    %635 = vmatpush.msra.mxu0 %v634
    %v636 = vand.u32 %v65, 4294901760
    %637 = vmatpush.msra.mxu0 %v636
    %v638 = vand.u32 %v64, 4294901760
    %639 = vmatpush.msra.mxu0 %v638
    %v640 = vand.u32 %v63, 4294901760
    %641 = vmatpush.msra.mxu0 %v640
    %v642 = vand.u32 %v62, 4294901760
    %643 = vmatpush.msra.mxu0 %v642
    %v644 = vand.u32 %v61, 4294901760
    %645 = vmatpush.msra.mxu0 %v644
    %v646 = vand.u32 %v60, 4294901760
    %647 = vmatpush.msra.mxu0 %v646
    %v648 = vand.u32 %v419, 4294901760
    %v649 = vsub.f32 %v419, %v648
    %v650 = vand.u32 %v649, 4294901760
    %651 = vmatmul.f32.gmra.mxu0 %v650
    %v652 = vpop.f32.mrf.mxu0
    %v653 = vadd.f32 %v614, %v652
    %654 = vdwg.mxu0
    %v655 = vand.u32 %v75, 4294901760
    %v656 = vsub.f32 %v75, %v655
    %v657 = vand.u32 %v656, 4294901760
    %658 = vmatpush.msra.mxu0 %v657
    %v659 = vand.u32 %v74, 4294901760
    %v660 = vsub.f32 %v74, %v659
    %v661 = vand.u32 %v660, 4294901760
    %662 = vmatpush.msra.mxu0 %v661
    %v663 = vand.u32 %v73, 4294901760
    %v664 = vsub.f32 %v73, %v663
    %v665 = vand.u32 %v664, 4294901760
    %666 = vmatpush.msra.mxu0 %v665
    %v667 = vand.u32 %v72, 4294901760
    %v668 = vsub.f32 %v72, %v667
    %v669 = vand.u32 %v668, 4294901760
    %670 = vmatpush.msra.mxu0 %v669
    %v671 = vand.u32 %v71, 4294901760
    %v672 = vsub.f32 %v71, %v671
    %v673 = vand.u32 %v672, 4294901760
    %674 = vmatpush.msra.mxu0 %v673
    %v675 = vand.u32 %v70, 4294901760
    %v676 = vsub.f32 %v70, %v675
    %v677 = vand.u32 %v676, 4294901760
    %678 = vmatpush.msra.mxu0 %v677
    %v679 = vand.u32 %v69, 4294901760
    %v680 = vsub.f32 %v69, %v679
    %v681 = vand.u32 %v680, 4294901760
    %682 = vmatpush.msra.mxu0 %v681
    %v683 = vand.u32 %v68, 4294901760
    %v684 = vsub.f32 %v68, %v683
    %v685 = vand.u32 %v684, 4294901760
    %686 = vmatpush.msra.mxu0 %v685
    %v687 = vand.u32 %v67, 4294901760
    %v688 = vsub.f32 %v67, %v687
    %v689 = vand.u32 %v688, 4294901760
    %690 = vmatpush.msra.mxu0 %v689
    %v691 = vand.u32 %v66, 4294901760
    %v692 = vsub.f32 %v66, %v691
    %v693 = vand.u32 %v692, 4294901760
    %694 = vmatpush.msra.mxu0 %v693
    %v695 = vand.u32 %v65, 4294901760
    %v696 = vsub.f32 %v65, %v695
    %v697 = vand.u32 %v696, 4294901760
    %698 = vmatpush.msra.mxu0 %v697
    %v699 = vand.u32 %v64, 4294901760
    %v700 = vsub.f32 %v64, %v699
    %v701 = vand.u32 %v700, 4294901760
    %702 = vmatpush.msra.mxu0 %v701
    %v703 = vand.u32 %v63, 4294901760
    %v704 = vsub.f32 %v63, %v703
    %v705 = vand.u32 %v704, 4294901760
    %706 = vmatpush.msra.mxu0 %v705
    %v707 = vand.u32 %v62, 4294901760
    %v708 = vsub.f32 %v62, %v707
    %v709 = vand.u32 %v708, 4294901760
    %710 = vmatpush.msra.mxu0 %v709
    %v711 = vand.u32 %v61, 4294901760
    %v712 = vsub.f32 %v61, %v711
    %v713 = vand.u32 %v712, 4294901760
    %714 = vmatpush.msra.mxu0 %v713
    %v715 = vand.u32 %v60, 4294901760
    %v716 = vsub.f32 %v60, %v715
    %v717 = vand.u32 %v716, 4294901760
    %718 = vmatpush.msra.mxu0 %v717
    %v719 = vand.u32 %v419, 4294901760
    %720 = vmatmul.f32.gmra.mxu0 %v719
    %v721 = vpop.f32.mrf.mxu0
    %v722 = vadd.f32 %v653, %v721
    %723 = vdwg.mxu0
    %v724 = vand.u32 %v75, 4294901760
    %725 = vmatpush.msra.mxu0 %v724
    %v726 = vand.u32 %v74, 4294901760
    %727 = vmatpush.msra.mxu0 %v726
    %v728 = vand.u32 %v73, 4294901760
    %729 = vmatpush.msra.mxu0 %v728
    %v730 = vand.u32 %v72, 4294901760
    %731 = vmatpush.msra.mxu0 %v730
    %v732 = vand.u32 %v71, 4294901760
    %733 = vmatpush.msra.mxu0 %v732
    %v734 = vand.u32 %v70, 4294901760
    %735 = vmatpush.msra.mxu0 %v734
    %v736 = vand.u32 %v69, 4294901760
    %737 = vmatpush.msra.mxu0 %v736
    %v738 = vand.u32 %v68, 4294901760
    %739 = vmatpush.msra.mxu0 %v738
    %v740 = vand.u32 %v67, 4294901760
    %741 = vmatpush.msra.mxu0 %v740
    %v742 = vand.u32 %v66, 4294901760
    %743 = vmatpush.msra.mxu0 %v742
    %v744 = vand.u32 %v65, 4294901760
    %745 = vmatpush.msra.mxu0 %v744
    %v746 = vand.u32 %v64, 4294901760
    %747 = vmatpush.msra.mxu0 %v746
    %v748 = vand.u32 %v63, 4294901760
    %749 = vmatpush.msra.mxu0 %v748
    %v750 = vand.u32 %v62, 4294901760
    %751 = vmatpush.msra.mxu0 %v750
    %v752 = vand.u32 %v61, 4294901760
    %753 = vmatpush.msra.mxu0 %v752
    %v754 = vand.u32 %v60, 4294901760
    %755 = vmatpush.msra.mxu0 %v754
    %v756 = vand.u32 %v419, 4294901760
    %757 = vmatmul.f32.gmra.mxu0 %v756
    %v758 = vpop.f32.mrf.mxu0
    %v759 = vadd.f32 %v722, %v758
    %760 = vdwg.mxu0
    %v761 = vmul.f32 %v759, 0.032258064
    %v762 = vrsqrt.pop %v761
    %v763 = vmul.f32 %v762, %v761
    %v764 = vmul.f32 %v763, %v762
    %v765 = vmul.f32 0.5, %v764
    %v766 = vsub.f32 1.5, %v765
    %v767 = vmul.f32 %v762, %v766
    %v768 = vmul.f32 %v761, %v767
    %vm769 = vcmp.eq.f32.partialorder %v761, inf
    %v770 = vsel %vm769, %v761, %v768
    %vm771 = vcmp.eq.f32.partialorder %v761, 0.0
    %v772 = vand.u32 %v761, 2147483648
    %v773 = vsel %vm771, %v772, %v770
    %v774 = vadd.f32 %v773, 1e-06
    %v775 = vrcp.pop %v774
    %v776 = vmul.f32 %v774, %v775
    %v777 = vsub.f32 1.0, %v776
    %v778 = vmul.f32 %v775, %v777
    %v779 = vadd.f32 %v775, %v778
    %vm780 = vweird.f32 %v774
    %vm781 = vweird.f32 %v775
    %vm782 = vmor %vm780, %vm781
    %v783 = vsel %vm782, %v775, %v779
    %v784 = vand.u32 2147483647, %v774
    %vm785 = vcmp.eq.f32.partialorder %v784, 8.507059e+37
    %v786 = vand.u32 %v774, 2147483648
    %v787 = vor.u32 1.1754944e-38, %v786
    %v788 = vsel %vm785, %v787, %v783
    %v789 = vmul.f32 %v418, %v788
    %v790 = vperm.slane %v59, 0
    %v791 = vmul.f32 %v789, %v790
    %v792 = vperm.slane %v59, 1
    %v793 = vadd.f32 %v791, %v792
    %794 = vst [vmem:[#allocation8] sm:$0xff] %v793
    // Predicated region
    $region26: #{tpu_custom_call.1} parent=1 // pred_check
      _
    $region27: #{tpu_custom_call.1} parent=1 // pred_check_branch
      %796 = sbr.rel (0) target = $region29
    $region28: #{tpu_custom_call.1} parent=1 // pred_region
      %798 = vsyncadd [#allocation4], 0
      %s800 = sshll.u32 [#allocation8], 4
      %s801 = int_to_ptr.vmem [resolvable:$true] %s800
      %s802 = sshll.u32 %s3, 4
      %s803 = int_to_ptr.hbm [resolvable:$true] %s802
      %805 = dma.vmem_to_hbm [thread:$0]  %s801, 128, %s803, [#allocation4]
    $region29: #{tpu_custom_call.1} parent=1 // pred_fallthru
      _
    // Predicated region
    $region30: #{tpu_custom_call.1} parent=1 // pred_check
      _
    $region31: #{tpu_custom_call.1} parent=1 // pred_check_branch
      %807 = sbr.rel (0) target = $region33
    $region32: #{tpu_custom_call.1} parent=1 // pred_region
      %809 = dma.done [#allocation4], 128
    $region33: #{tpu_custom_call.1} parent=1 // pred_fallthru
      _
    %810 = vsyncpa [#allocation3], 1
    %811 = vsyncpa [#allocation6], 1
    %812 = vsyncpa [#allocation4], 1

</llo_original>
